<compile_context>
chip_gen: v5e
topology: v5e:2x2
jax: 0.10.0
libtpu: 0.0.40
codegen_flags: <defaults>
</compile_context>

<pallas_src>
import math

import jax
import jax.numpy as jnp
import numpy as np
from jax import lax
from jax.experimental import pallas as pl
from jax.experimental.pallas import tpu as pltpu

MAX_TEXT_LEN = 256  # multiple of 128 -> lane-dense, unmasked output stores


def _contrastive_kernel(vis_ref, txt_ref, maskbias_ref, params_ref, out_ref):
    # vis_ref      : (1, TQ, C)            VMEM
    # txt_ref      : (1, T, C)             VMEM (resident across Q tiles)
    # maskbias_ref : (1, 1, T)             VMEM (f32; 0.0 valid, -inf invalid)
    # params_ref   : (2,)                  SMEM (scale, bias)
    # out_ref      : (1, TQ, MAX_TEXT_LEN) VMEM
    v = vis_ref[0]          # (TQ, C)
    t = txt_ref[0]          # (T, C)
    mb = maskbias_ref[0]    # (1, T) -> broadcasts over TQ rows

    scale = params_ref[0]
    bias = params_ref[1]

    # visual @ text^T without materializing a transpose: contract on C (last
    # axis of both operands); maps straight onto the MXU.
    sim = lax.dot_general(
        v, t, (((1,), (1,)), ((), ())),
        preferred_element_type=jnp.float32)          # (TQ, T)

    # scale * sim + bias + additive mask (0 / -inf) -- fused epilogue.
    sim = sim * scale + bias + mb

    T = sim.shape[-1]
    pad = out_ref.shape[-1] - T
    if pad > 0:  # static: pad in-register, single full-width store below
        sim = jnp.concatenate(
            [sim, jnp.full((sim.shape[0], pad), -jnp.inf, dtype=jnp.float32)],
            axis=-1)
    out_ref[0] = sim.astype(out_ref.dtype)


def _pick_tq(Q):
    """MXU-friendly query tile: 256 for large Q, else padded-Q in one tile."""
    if Q >= 256:
        return 256
    return max(8, ((Q + 7) // 8) * 8)   # sublane-aligned


def contrastive_embed(visual_feat, text_feat, text_token_mask,
                      max_text_len=MAX_TEXT_LEN, log_scale=None, bias=None):
    """JAX/Pallas equivalent of ContrastiveEmbed.forward.

    log_scale: None / 'none' -> no normalization
               'auto'        -> divide by sqrt(C)
               float / array -> multiply by exp(log_scale)  (learnable param)
    bias:      None or scalar (learnable param, e.g. -log((1-0.01)/0.01))
    """
    B, Q, C = visual_feat.shape
    Bt, T, Ct = text_feat.shape
    assert B == Bt and C == Ct and text_token_mask.shape == (B, T)
    assert T <= max_text_len, (
        f"text length {T} exceeds max_text_len {max_text_len}")

    if log_scale is None or (isinstance(log_scale, str) and log_scale == "none"):
        scale = jnp.float32(1.0)
    elif isinstance(log_scale, str) and log_scale == "auto":
        scale = jnp.float32(1.0 / math.sqrt(C))
    else:
        scale = jnp.exp(jnp.asarray(log_scale, jnp.float32).reshape(()))

    bias_add = (jnp.float32(0.0) if bias is None
                else jnp.asarray(bias, jnp.float32).reshape(()))

    # Packed SMEM scalars: [scale, bias]
    params = jnp.stack([scale, bias_add]).astype(jnp.float32)      # (2,)

    # Additive mask bias: 0.0 for valid tokens, -inf for invalid.
    mask_bias = jnp.where(text_token_mask, jnp.float32(0.0),
                          jnp.float32(-jnp.inf)).reshape(B, 1, T)

    # Q tiling (pad Q up to a tile multiple; padded rows are sliced off).
    TQ = _pick_tq(Q)
    Qp = ((Q + TQ - 1) // TQ) * TQ
    if Qp != Q:
        visual_feat = jnp.pad(visual_feat, ((0, 0), (0, Qp - Q), (0, 0)))
    nq = Qp // TQ

    out = pl.pallas_call(
        _contrastive_kernel,
        out_shape=jax.ShapeDtypeStruct((B, Qp, max_text_len), visual_feat.dtype),
        grid_spec=pltpu.PrefetchScalarGridSpec(
            num_scalar_prefetch=0,
            grid=(B, nq),
            in_specs=[
                pl.BlockSpec((1, TQ, C), lambda b, q: (b, q, 0)),   # visual
                pl.BlockSpec((1, T, C), lambda b, q: (b, 0, 0)),    # text (Q-resident)
                pl.BlockSpec((1, 1, T), lambda b, q: (b, 0, 0)),    # mask bias
                pl.BlockSpec(memory_space=pltpu.MemorySpace.SMEM),  # [scale, bias]
            ],
            out_specs=pl.BlockSpec((1, TQ, max_text_len),
                                   lambda b, q: (b, q, 0)),
        ),
        compiler_params=pltpu.CompilerParams(
            dimension_semantics=("parallel", "parallel")),
    )(visual_feat, text_feat, mask_bias, params)

    if Qp != Q:
        out = out[:, :Q, :]
    return out


def _reference(visual_feat, text_feat, text_token_mask,
               max_text_len, log_scale, bias):
    res = jnp.einsum("bqc,btc->bqt", visual_feat, text_feat)
    if isinstance(log_scale, (float, int)):
        res = res * jnp.exp(jnp.float32(log_scale))
    elif log_scale == "auto":
        res = res / math.sqrt(visual_feat.shape[-1])
    if bias is not None:
        res = res + jnp.float32(bias)
    res = jnp.where(text_token_mask[:, None, :], res, -jnp.inf)
    B, Q, T = res.shape
    new_res = jnp.full((B, Q, max_text_len), -jnp.inf, dtype=res.dtype)
    return new_res.at[..., :T].set(res)


if __name__ == "__main__":
    key = jax.random.PRNGKey(0)
    k1, k2, k3 = jax.random.split(key, 3)

    B, Q, C, T = 2, 8, 32, 8

    visual_feat = jax.random.normal(k1, (B, Q, C), dtype=jnp.float32)
    text_feat = jax.random.normal(k2, (B, T, C), dtype=jnp.float32)
    text_token_mask = jax.random.uniform(k3, (B, T)) > 0.3   # bool mask

    # Deterministic "learnable" parameters (synthetic init, as in __init__):
    log_scale = 0.0                                   # nn.Parameter([0.0])
    bias = -math.log((1 - 0.01) / 0.01)               # nn.Parameter([-4.595...])

    out = contrastive_embed(visual_feat, text_feat, text_token_mask,
                            max_text_len=MAX_TEXT_LEN,
                            log_scale=log_scale, bias=bias)
    out = jax.block_until_ready(out)

    ref = _reference(visual_feat, text_feat, text_token_mask,
                     MAX_TEXT_LEN, log_scale, bias)
    assert out.shape == (B, Q, MAX_TEXT_LEN)
    assert np.allclose(np.asarray(out), np.asarray(ref), rtol=1e-5, atol=1e-5)

    print("KERNEL_OK")
</pallas_src>

<mosaic_0001>
module attributes {stable_mosaic.version = 11 : i64} {
  func.func @_contrastive_kernel(%arg0: i32, %arg1: i32, %arg2: memref<1x8x32xf32, #tpu.memory_space<vmem>>, %arg3: memref<1x8x32xf32, #tpu.memory_space<vmem>>, %arg4: memref<1x1x8xf32, #tpu.memory_space<vmem>>, %arg5: memref<2xf32, #tpu.memory_space<smem>>, %arg6: memref<1x8x256xf32, #tpu.memory_space<vmem>>) attributes {dimension_semantics = [#tpu.dimension_semantics<parallel>, #tpu.dimension_semantics<parallel>], iteration_bounds = array<i64: 2, 1>, scalar_prefetch = 0 : i64, scratch_operands = 0 : i64, tpu.core_type = #tpu.core_type<tc>, window_params = [{transform_indices = @transform_0, window_bounds = array<i64: 1, 8, 32>}, {transform_indices = @transform_1, window_bounds = array<i64: 1, 8, 32>}, {transform_indices = @transform_2, window_bounds = array<i64: 1, 1, 8>}, {transform_indices = @transform_3, window_bounds = array<i64: 2>}, {transform_indices = @transform_4, window_bounds = array<i64: 1, 8, 256>}]} {
    %c0 = arith.constant 0 : index
    %c0_0 = arith.constant 0 : index
    %c0_1 = arith.constant 0 : index
    %0 = vector.load %arg2[%c0, %c0_0, %c0_1] : memref<1x8x32xf32, #tpu.memory_space<vmem>>, vector<1x8x32xf32>
    %1 = vector.shape_cast %0 : vector<1x8x32xf32> to vector<8x32xf32>
    %c0_2 = arith.constant 0 : index
    %c0_3 = arith.constant 0 : index
    %c0_4 = arith.constant 0 : index
    %2 = vector.load %arg3[%c0_2, %c0_3, %c0_4] : memref<1x8x32xf32, #tpu.memory_space<vmem>>, vector<1x8x32xf32>
    %3 = vector.shape_cast %2 : vector<1x8x32xf32> to vector<8x32xf32>
    %c0_5 = arith.constant 0 : index
    %c0_6 = arith.constant 0 : index
    %c0_7 = arith.constant 0 : index
    %4 = vector.load %arg4[%c0_5, %c0_6, %c0_7] : memref<1x1x8xf32, #tpu.memory_space<vmem>>, vector<1x1x8xf32>
    %5 = vector.shape_cast %4 : vector<1x1x8xf32> to vector<1x8xf32>
    %c0_8 = arith.constant 0 : index
    %6 = memref.load %arg5[%c0_8] : memref<2xf32, #tpu.memory_space<smem>>
    %c1 = arith.constant 1 : index
    %7 = memref.load %arg5[%c1] : memref<2xf32, #tpu.memory_space<smem>>
    %cst = arith.constant dense<0.000000e+00> : vector<8x8xf32>
    %8 = tpu.matmul %1, %3, %cst {dimension_numbers = #tpu.dot_dimension_numbers<[1], [1], [0], [0], [0, 0, 1, 0], [], []>} : vector<8x32xf32>, vector<8x32xf32>, vector<8x8xf32> -> vector<8x8xf32>
    %9 = vector.broadcast %6 : f32 to vector<8x8xf32>
    %10 = arith.mulf %8, %9 : vector<8x8xf32>
    %11 = vector.broadcast %7 : f32 to vector<8x8xf32>
    %12 = arith.addf %10, %11 : vector<8x8xf32>
    %13 = vector.broadcast %5 : vector<1x8xf32> to vector<8x8xf32>
    %14 = arith.addf %12, %13 : vector<8x8xf32>
    %cst_9 = arith.constant 0xFF800000 : f32
    %15 = vector.broadcast %cst_9 : f32 to vector<8x248xf32>
    %16 = tpu.concatenate %14, %15 in 1 : vector<8x8xf32>, vector<8x248xf32> -> vector<8x256xf32>
    %c0_10 = arith.constant 0 : index
    %c0_11 = arith.constant 0 : index
    %c0_12 = arith.constant 0 : index
    %17 = vector.load %arg6[%c0_10, %c0_11, %c0_12] : memref<1x8x256xf32, #tpu.memory_space<vmem>>, vector<1x8x256xf32>
    %18 = vector.shape_cast %17 : vector<1x8x256xf32> to vector<8x256xf32>
    %19 = vector.shape_cast %16 : vector<8x256xf32> to vector<1x8x256xf32>
    tpu.vector_store %arg6[%c0_10, %c0_11, %c0_12], %19 {strides = array<i32>} : memref<1x8x256xf32, #tpu.memory_space<vmem>>, vector<1x8x256xf32>,
    return
  }
  func.func @transform_0(%arg0: i32, %arg1: i32) -> (i32, i32, i32) {
    %c0_i32 = arith.constant 0 : i32
    %c0_i32_0 = arith.constant 0 : i32
    return %arg0, %arg1, %c0_i32 : i32, i32, i32
  }
  func.func @transform_1(%arg0: i32, %arg1: i32) -> (i32, i32, i32) {
    %c0_i32 = arith.constant 0 : i32
    %c0_i32_0 = arith.constant 0 : i32
    %c0_i32_1 = arith.constant 0 : i32
    return %arg0, %c0_i32, %c0_i32_0 : i32, i32, i32
  }
  func.func @transform_2(%arg0: i32, %arg1: i32) -> (i32, i32, i32) {
    %c0_i32 = arith.constant 0 : i32
    %c0_i32_0 = arith.constant 0 : i32
    %c0_i32_1 = arith.constant 0 : i32
    return %arg0, %c0_i32, %c0_i32_0 : i32, i32, i32
  }
  func.func @transform_3(%arg0: i32, %arg1: i32) -> i32 {
    %c0_i32 = arith.constant 0 : i32
    %c0_i32_0 = arith.constant 0 : i32
    return %c0_i32 : i32
  }
  func.func @transform_4(%arg0: i32, %arg1: i32) -> (i32, i32, i32) {
    %c0_i32 = arith.constant 0 : i32
    %c0_i32_0 = arith.constant 0 : i32
    return %arg0, %arg1, %c0_i32 : i32, i32, i32
  }
}

</mosaic_0001>

<llo_original>
// kernel: tpu_custom_call.1
$region0: #{tpu_custom_call.1}
  #allocation0 [shape = 'u32[]', space=smem, size = 0x4, offset = 0x4, fixed_abs, tag = 'smem constant byte address 0x4 - core index']
  #allocation1 [shape = 'u32[72,128]{1,0:T(1,128)}', space=vmem, size = 0x9000, scoped, tag = 'internal scratch']
  %s0 = inlined_call_operand.hbm [shape: f32[2,8,32], index: 0, kind: input, shape index: {}]
  %s1 = inlined_call_operand.hbm [shape: f32[2,8,32], index: 1, kind: input, shape index: {}]
  %s2 = inlined_call_operand.hbm [shape: f32[2,1,8], index: 2, kind: input, shape index: {}]
  %s3 = inlined_call_operand.vmem [shape: f32[2], index: 3, kind: input, shape index: {}]
  %s4 = inlined_call_operand.hbm [shape: f32[2,8,256], index: 4, kind: output, shape index: {}]
  %s5 = sld [smem:[#allocation0]]
  $region65: #{tpu_custom_call.1} parent=0
    _
  %s7 = ssub.s32 1, %s5
  %s8 = scalar_select 0, %s7, %s5
  $region1: #{tpu_custom_call.1} parent=0
    #allocation2 [shape = 'u8[8192]{0}', space=vmem, size = 0x2000, scoped, tag = 'input window, operand 0']
    #allocation3 [shape = 's32[2]{0}', space=sflag, size = 0x8, scoped, tag = 'scoped memory for tpu_custom_call.1']
    #allocation4 [shape = 's32[2]{0}', space=sflag, size = 0x8, scoped, tag = 'scoped memory for tpu_custom_call.1']
    #allocation5 [shape = 's32[2]{0}', space=sflag, size = 0x8, scoped, tag = 'scoped memory for tpu_custom_call.1']
    #allocation6 [shape = 'u8[8192]{0}', space=vmem, size = 0x2000, scoped, tag = 'input window, operand 1']
    #allocation7 [shape = 's32[2]{0}', space=sflag, size = 0x8, scoped, tag = 'scoped memory for tpu_custom_call.1']
    #allocation8 [shape = 'u8[1024]{0}', space=vmem, size = 0x400, scoped, tag = 'input window, operand 2']
    #allocation9 [shape = 'u8[512]{0}', space=smem, size = 0x200, scoped, tag = 'input window, operand 3, single buffered']
    #allocation10 [shape = 'u8[16384]{0}', space=vmem, size = 0x4000, scoped, tag = 'output window, operand 0']
    %9 = vsyncpa [#allocation3], 0
    %s10 = scalar_lea.sflag [#allocation3], 1
    %11 = vsyncpa %s10, 0
    %12 = vsyncpa [#allocation7], 0
    %s13 = scalar_lea.sflag [#allocation7], 1
    %14 = vsyncpa %s13, 0
    %15 = vsyncpa [#allocation5], 0
    %16 = vsyncpa [#allocation4], 0
    %s17 = scalar_lea.sflag [#allocation4], 1
    %18 = vsyncpa %s17, 0
    loop: start=0, step=1, limit=4
    $region2: #{tpu_custom_call.1} parent=1 // loop_pre_header
      _
    $region3: #{tpu_custom_call.1} parent=1 // loop_header
      %s20 = sphi 0, %s24
      %p21 = scmp.ge.s32.totalorder %s20, 4
      %s27 = sphi 0, %s39
      %s28 = sphi 0, %s35
      %s29 = sphi 0, %s27
      %s30 = sphi 0, %s28
      %s31 = sphi 0, %s29
      %s32 = sphi 0, %s30
      %s44 = sphi 0, %s46
      %s47 = sphi 0, %s44
      %s48 = sphi 0, %s47
      %s64 = sphi 0, %s48
      %s70 = sphi 0, %s72
      %s73 = sphi 0, %s70
      %s74 = sphi 0, %s73
      %s90 = sphi 0, %s74
      %s96 = sphi 0, %s98
      %s99 = sphi 0, %s96
      %s100 = sphi 0, %s99
      %s116 = sphi 0, %s100
      %s120 = sphi 0, %s120
      %s122 = sphi 0, %s120
      %s123 = sphi 0, %s122
      %s137 = sphi 0, %s123
      %s145 = sphi 0, %s147
      %s148 = sphi 0, %s145
      %s149 = sphi 0, %s148
      %s165 = sphi 0, %s149
    $region4: #{tpu_custom_call.1} parent=1 // loop_header_branch
      %23 = sbr.rel (%p21) target = $region8
    $region5: #{tpu_custom_call.1} parent=1 // loop_body
      %s25 = ssub.s32 %s20, 1
      %s26 = ssub.s32 %s20, 2
      %s33 = sadd.s32 1, %s28
      %p34 = scmp.ge.s32.totalorder %s33, 1
      %s35 = scalar_select %p34, 0, %s33
      %s36 = sadd.s32 1, %s27
      %s37 = scalar_select %p34, %s36, %s27
      %p38 = scmp.ge.s32.totalorder %s37, 2
      %s39 = scalar_select %p38, 0, %s37
      %s40 = ssub.s32 %s27, %s39
      %s41 = ssub.s32 %s28, %s35
      %s42 = sor.u32 %s40, %s41
      %p43 = scmp.eq.s32.totalorder %s42, 0
      %s45 = sadd.s32 %s44, 1
      %s46 = scalar_select %p43, %s44, %s45
      %p49 = pneg %p43
      %p50 = scmp.eq.s32.totalorder %s20, 1
      %p51 = por %p49, %p50
      %p52 = scmp.ne.s32.totalorder %s44, %s47
      %p53 = scmp.eq.s32.totalorder %s20, 0
      %p54 = por %p52, %p53
      %p55 = scmp.ne.s32.totalorder %s44, %s47
      %p56 = scmp.eq.s32.totalorder %s25, 1
      %p57 = por %p55, %p56
      %p58 = scmp.ne.s32.totalorder %s47, %s48
      %p59 = scmp.eq.s32.totalorder %s25, 0
      %p60 = por %p58, %p59
      %p61 = scmp.ne.s32.totalorder %s47, %s48
      %p62 = scmp.eq.s32.totalorder %s26, 1
      %p63 = por %p61, %p62
      %p65 = scmp.ne.s32.totalorder %s48, %s64
      %p66 = scmp.eq.s32.totalorder %s26, 0
      %p67 = por %p65, %p66
      %s68 = ssub.s32 %s27, %s39
      %p69 = scmp.eq.s32.totalorder %s68, 0
      %s71 = sadd.s32 %s70, 1
      %s72 = scalar_select %p69, %s70, %s71
      %p75 = pneg %p69
      %p76 = scmp.eq.s32.totalorder %s20, 1
      %p77 = por %p75, %p76
      %p78 = scmp.ne.s32.totalorder %s70, %s73
      %p79 = scmp.eq.s32.totalorder %s20, 0
      %p80 = por %p78, %p79
      %p81 = scmp.ne.s32.totalorder %s70, %s73
      %p82 = scmp.eq.s32.totalorder %s25, 1
      %p83 = por %p81, %p82
      %p84 = scmp.ne.s32.totalorder %s73, %s74
      %p85 = scmp.eq.s32.totalorder %s25, 0
      %p86 = por %p84, %p85
      %p87 = scmp.ne.s32.totalorder %s73, %s74
      %p88 = scmp.eq.s32.totalorder %s26, 1
      %p89 = por %p87, %p88
      %p91 = scmp.ne.s32.totalorder %s74, %s90
      %p92 = scmp.eq.s32.totalorder %s26, 0
      %p93 = por %p91, %p92
      %s94 = ssub.s32 %s27, %s39
      %p95 = scmp.eq.s32.totalorder %s94, 0
      %s97 = sadd.s32 %s96, 1
      %s98 = scalar_select %p95, %s96, %s97
      %p101 = pneg %p95
      %p102 = scmp.eq.s32.totalorder %s20, 1
      %p103 = por %p101, %p102
      %p104 = scmp.ne.s32.totalorder %s96, %s99
      %p105 = scmp.eq.s32.totalorder %s20, 0
      %p106 = por %p104, %p105
      %p107 = scmp.ne.s32.totalorder %s96, %s99
      %p108 = scmp.eq.s32.totalorder %s25, 1
      %p109 = por %p107, %p108
      %p110 = scmp.ne.s32.totalorder %s99, %s100
      %p111 = scmp.eq.s32.totalorder %s25, 0
      %p112 = por %p110, %p111
      %p113 = scmp.ne.s32.totalorder %s99, %s100
      %p114 = scmp.eq.s32.totalorder %s26, 1
      %p115 = por %p113, %p114
      %p117 = scmp.ne.s32.totalorder %s100, %s116
      %p118 = scmp.eq.s32.totalorder %s26, 0
      %p119 = por %p117, %p118
      %s121 = sadd.s32 %s120, 1
      %p124 = scmp.eq.s32.totalorder %s20, 1
      %p125 = scmp.ne.s32.totalorder %s120, %s122
      %p126 = scmp.eq.s32.totalorder %s20, 0
      %p127 = por %p125, %p126
      %p128 = scmp.ne.s32.totalorder %s120, %s122
      %p129 = scmp.eq.s32.totalorder %s25, 1
      %p130 = por %p128, %p129
      %p131 = scmp.ne.s32.totalorder %s122, %s123
      %p132 = scmp.eq.s32.totalorder %s25, 0
      %p133 = por %p131, %p132
      %p134 = scmp.ne.s32.totalorder %s122, %s123
      %p135 = scmp.eq.s32.totalorder %s26, 1
      %p136 = por %p134, %p135
      %p138 = scmp.ne.s32.totalorder %s123, %s137
      %p139 = scmp.eq.s32.totalorder %s26, 0
      %p140 = por %p138, %p139
      %s141 = ssub.s32 %s27, %s39
      %s142 = ssub.s32 %s28, %s35
      %s143 = sor.u32 %s141, %s142
      %p144 = scmp.eq.s32.totalorder %s143, 0
      %s146 = sadd.s32 %s145, 1
      %s147 = scalar_select %p144, %s145, %s146
      %p150 = pneg %p144
      %p151 = scmp.eq.s32.totalorder %s20, 1
      %p152 = por %p150, %p151
      %p153 = scmp.ne.s32.totalorder %s145, %s148
      %p154 = scmp.eq.s32.totalorder %s20, 0
      %p155 = por %p153, %p154
      %p156 = scmp.ne.s32.totalorder %s145, %s148
      %p157 = scmp.eq.s32.totalorder %s25, 1
      %p158 = por %p156, %p157
      %p159 = scmp.ne.s32.totalorder %s148, %s149
      %p160 = scmp.eq.s32.totalorder %s25, 0
      %p161 = por %p159, %p160
      %p162 = scmp.ne.s32.totalorder %s148, %s149
      %p163 = scmp.eq.s32.totalorder %s26, 1
      %p164 = por %p162, %p163
      %p166 = scmp.ne.s32.totalorder %s149, %s165
      %p167 = scmp.eq.s32.totalorder %s26, 0
      %p168 = por %p166, %p167
      %p169 = scmp.le.s32.totalorder 1, %s20
      %p170 = scmp.lt.s32.totalorder %s20, 3
      %p171 = pnand %p169, %p170
      %p172 = pneg %p171
      // Predicated region
      $region9: #{tpu_custom_call.1} parent=5 // pred_check
        _
      $region10: #{tpu_custom_call.1} parent=5 // pred_check_branch
        %174 = sbr.rel (%p171) target = $region12
      $region11: #{tpu_custom_call.1} parent=5 // pred_region
        %s175 = ssub.s32 %s20, 1
        // Predicated region
        $region13: #{tpu_custom_call.1} parent=11 // pred_check
          %p176 = pneg %p133
        $region14: #{tpu_custom_call.1} parent=11 // pred_check_branch
          %178 = sbr.rel (%p176) target = $region16
        $region15: #{tpu_custom_call.1} parent=11 // pred_region
          %180 = vsyncadd [#allocation5], 0
          %s182 = sshll.u32 %s3, 4
          %s183 = int_to_ptr.vmem [resolvable:$true] %s182
          %185 = dma.vmem_to_smem %s183, 16, [#allocation9], [#allocation5]
        $region16: #{tpu_custom_call.1} parent=11 // pred_fallthru
          _
      $region12: #{tpu_custom_call.1} parent=5 // pred_fallthru
        _
      %p186 = scmp.lt.s32.totalorder %s20, 2
      // Predicated region
      $region17: #{tpu_custom_call.1} parent=5 // pred_check
        %p187 = pneg %p186
      $region18: #{tpu_custom_call.1} parent=5 // pred_check_branch
        %189 = sbr.rel (%p187) target = $region20
      $region19: #{tpu_custom_call.1} parent=5 // pred_region
        // Predicated region
        $region21: #{tpu_custom_call.1} parent=19 // pred_check
          %p190 = pneg %p54
        $region22: #{tpu_custom_call.1} parent=19 // pred_check_branch
          %192 = sbr.rel (%p190) target = $region24
        $region23: #{tpu_custom_call.1} parent=19 // pred_region
          %s193 = sand.u32 %s44, 1
          %s194 = scalar_lea.sflag [#allocation3], %s193
          %s195 = sand.u32 %s44, 1
          %s196 = smul.addr %s195, 8
          %s197 = scalar_lea.vmem [#allocation2], %s196
          %199 = vsyncadd %s194, 0
          %s200 = sadd.s32 %s28, %s27
          %s201 = smul.addr %s200, 8
          %s202 = scalar_lea.hbm %s0, %s201
          %s204 = sshll.u32 %s202, 4
          %s205 = int_to_ptr.hbm [resolvable:$true] %s204
          %s206 = sshll.u32 %s197, 4
          %s207 = int_to_ptr.vmem [resolvable:$true] %s206
          %209 = dma.hbm_to_vmem [thread:$0]  %s205, 128, %s207, %s194
        $region24: #{tpu_custom_call.1} parent=19 // pred_fallthru
          _
        // Predicated region
        $region25: #{tpu_custom_call.1} parent=19 // pred_check
          %p210 = pneg %p80
        $region26: #{tpu_custom_call.1} parent=19 // pred_check_branch
          %212 = sbr.rel (%p210) target = $region28
        $region27: #{tpu_custom_call.1} parent=19 // pred_region
          %s213 = sand.u32 %s20, 1
          %s214 = scalar_lea.sflag [#allocation7], %s213
          %s215 = sand.u32 %s70, 1
          %s216 = smul.addr %s215, 8
          %s217 = scalar_lea.vmem [#allocation6], %s216
          %219 = vsyncadd %s214, 0
          %s220 = smul.addr %s27, 8
          %s221 = scalar_lea.hbm %s1, %s220
          %s223 = sshll.u32 %s221, 4
          %s224 = int_to_ptr.hbm [resolvable:$true] %s223
          %s225 = sshll.u32 %s217, 4
          %s226 = int_to_ptr.vmem [resolvable:$true] %s225
          %228 = dma.hbm_to_vmem [thread:$0]  %s224, 128, %s226, %s214
        $region28: #{tpu_custom_call.1} parent=19 // pred_fallthru
          _
        // Predicated region
        $region29: #{tpu_custom_call.1} parent=19 // pred_check
          %p229 = pneg %p106
        $region30: #{tpu_custom_call.1} parent=19 // pred_check_branch
          %231 = sbr.rel (%p229) target = $region32
        $region31: #{tpu_custom_call.1} parent=19 // pred_region
          %s232 = sand.u32 %s20, 1
          %s233 = scalar_lea.sflag [#allocation7], %s232
          %s234 = sand.u32 %s96, 1
          %s235 = scalar_lea.vmem [#allocation8], %s234
          %237 = vsyncadd %s233, 0
          %s238 = scalar_lea.hbm %s2, %s27
          %s240 = sshll.u32 %s238, 4
          %s241 = int_to_ptr.hbm [resolvable:$true] %s240
          %s242 = sshll.u32 %s235, 4
          %s243 = int_to_ptr.vmem [resolvable:$true] %s242
          %245 = dma.hbm_to_vmem [thread:$0]  %s241, 16, %s243, %s233
        $region32: #{tpu_custom_call.1} parent=19 // pred_fallthru
          _
      $region20: #{tpu_custom_call.1} parent=5 // pred_fallthru
        _
      %p246 = scmp.le.s32.totalorder 1, %s20
      %p247 = scmp.lt.s32.totalorder %s20, 3
      %p248 = pnand %p246, %p247
      %p249 = pneg %p248
      // Predicated region
      $region33: #{tpu_custom_call.1} parent=5 // pred_check
        _
      $region34: #{tpu_custom_call.1} parent=5 // pred_check_branch
        %251 = sbr.rel (%p248) target = $region36
      $region35: #{tpu_custom_call.1} parent=5 // pred_region
        %s252 = ssub.s32 %s20, 1
        %s253 = sand.u32 %s47, 1
        %s254 = scalar_lea.sflag [#allocation3], %s253
        %s255 = sand.u32 %s47, 1
        %s256 = smul.addr %s255, 8
        %s257 = scalar_lea.vmem [#allocation2], %s256
        // Predicated region
        $region37: #{tpu_custom_call.1} parent=35 // pred_check
          %p258 = pneg %p60
        $region38: #{tpu_custom_call.1} parent=35 // pred_check_branch
          %260 = sbr.rel (%p258) target = $region40
        $region39: #{tpu_custom_call.1} parent=35 // pred_region
          %262 = dma.done %s254, 128
        $region40: #{tpu_custom_call.1} parent=35 // pred_fallthru
          _
        %s263 = sand.u32 %s25, 1
        %s264 = scalar_lea.sflag [#allocation7], %s263
        %s265 = sand.u32 %s73, 1
        %s266 = smul.addr %s265, 8
        %s267 = scalar_lea.vmem [#allocation6], %s266
        // Predicated region
        $region41: #{tpu_custom_call.1} parent=35 // pred_check
          %p268 = pneg %p86
        $region42: #{tpu_custom_call.1} parent=35 // pred_check_branch
          %270 = sbr.rel (%p268) target = $region44
        $region43: #{tpu_custom_call.1} parent=35 // pred_region
          %272 = dma.done %s264, 128
        $region44: #{tpu_custom_call.1} parent=35 // pred_fallthru
          _
        %s273 = sand.u32 %s25, 1
        %s274 = scalar_lea.sflag [#allocation7], %s273
        %s275 = sand.u32 %s99, 1
        %s276 = scalar_lea.vmem [#allocation8], %s275
        // Predicated region
        $region45: #{tpu_custom_call.1} parent=35 // pred_check
          %p277 = pneg %p112
        $region46: #{tpu_custom_call.1} parent=35 // pred_check_branch
          %279 = sbr.rel (%p277) target = $region48
        $region47: #{tpu_custom_call.1} parent=35 // pred_region
          %281 = dma.done %s274, 16
        $region48: #{tpu_custom_call.1} parent=35 // pred_fallthru
          _
        // Predicated region
        $region49: #{tpu_custom_call.1} parent=35 // pred_check
          %p282 = pneg %p133
        $region50: #{tpu_custom_call.1} parent=35 // pred_check_branch
          %284 = sbr.rel (%p282) target = $region52
        $region51: #{tpu_custom_call.1} parent=35 // pred_region
          %286 = dma.done [#allocation5], 16
        $region52: #{tpu_custom_call.1} parent=35 // pred_fallthru
          _
        %287 = sfence
        %s288 = sand.u32 %s47, 1
        %s289 = scalar_lea.sflag [#allocation3], %s288
        %s290 = sand.u32 %s47, 1
        %s291 = smul.addr %s290, 8
        %s292 = scalar_lea.vmem [#allocation2], %s291
        %p293 = pneg %p60
        %p294 = pneg %p57
        %s295 = sand.u32 %s25, 1
        %s296 = scalar_lea.sflag [#allocation7], %s295
        %s297 = sand.u32 %s73, 1
        %s298 = smul.addr %s297, 8
        %s299 = scalar_lea.vmem [#allocation6], %s298
        %p300 = pneg %p86
        %p301 = pneg %p83
        %s302 = sand.u32 %s25, 1
        %s303 = scalar_lea.sflag [#allocation7], %s302
        %s304 = sand.u32 %s99, 1
        %s305 = scalar_lea.vmem [#allocation8], %s304
        %p306 = pneg %p112
        %p307 = pneg %p109
        %p308 = pneg %p133
        %p309 = pneg %p130
        %p310 = pneg %p161
        %p311 = pneg %p158
        %s312 = sand.u32 %s148, 1
        %s313 = scalar_lea.sflag [#allocation4], %s312
        %s314 = sand.u32 %s148, 1
        %s315 = smul.addr %s314, 16
        %s316 = scalar_lea.vmem [#allocation10], %s315
        %v317 = vld [vmem:[%s257] sm:$0xff]
        %v318 = vld [vmem:[%s267] sm:$0xff]
        %v319 = vld [vmem:[%s276] sm:$0x1]
        %s320 = sld [smem:[#allocation9]]
        %s321 = sld [smem:[#allocation9 + $0x1]]
        %vm322 = vcmask 261120
        %v324 = vsel %vm322, %v317, 0
        %v327 = vsel %vm322, %v318, 0
        %329 = vmatpush.xpose.msra.mxu0 0.0
        %330 = vmatpush.xpose.msra.mxu0 0.0
        %331 = vmatpush.xpose.msra.mxu0 0.0
        %332 = vmatpush.xpose.msra.mxu0 0.0
        %333 = vmatpush.xpose.msra.mxu0 0.0
        %334 = vmatpush.xpose.msra.mxu0 0.0
        %335 = vmatpush.xpose.msra.mxu0 0.0
        %336 = vmatpush.xpose.msra.mxu0 0.0
        %337 = vmatpush.xpose.msra.mxu0 0.0
        %338 = vmatpush.xpose.msra.mxu0 0.0
        %339 = vmatpush.xpose.msra.mxu0 0.0
        %340 = vmatpush.xpose.msra.mxu0 0.0
        %341 = vmatpush.xpose.msra.mxu0 0.0
        %342 = vmatpush.xpose.msra.mxu0 0.0
        %343 = vmatpush.xpose.msra.mxu0 0.0
        %344 = vmatpush.xpose.msra.mxu0 %v327
        %345 = vmatmul.f32.gmra.mxu0 %v324
        %v346 = vpop.f32.mrf.mxu0
        %v347 = vadd.f32 0.0, %v346
        %348 = vdwg.mxu0
        %v349 = vstv %s320
        %v350 = vmul.f32 %v347, %v349
        %v351 = vstv %s321
        %v352 = vadd.f32 %v350, %v351
        %v354 = vperm.slane %v319, 0
        %v356 = vadd.f32 %v352, %v354
        %vm357 = vcmask 64512
        %v358 = vsel %vm357, %v356, -inf
        %359 = vst [vmem:[%s316] sm:$0xff] %v358
        %360 = vst [vmem:[%s316 + $0x8] sm:$0xff] -inf
        %s361 = sand.u32 %s148, 1
        %s362 = scalar_lea.sflag [#allocation4], %s361
        %s363 = sand.u32 %s148, 1
        %s364 = smul.addr %s363, 16
        %s365 = scalar_lea.vmem [#allocation10], %s364
        // Predicated region
        $region53: #{tpu_custom_call.1} parent=35 // pred_check
          %p366 = pneg %p158
        $region54: #{tpu_custom_call.1} parent=35 // pred_check_branch
          %368 = sbr.rel (%p366) target = $region56
        $region55: #{tpu_custom_call.1} parent=35 // pred_region
          %370 = vsyncadd %s362, 0
          %s371 = smul.addr %s30, 2
          %s372 = smul.addr %s29, 2
          %s373 = sadd.s32 %s371, %s372
          %s374 = smul.addr %s373, 8
          %s375 = scalar_lea.hbm %s4, %s374
          %s377 = sshll.u32 %s365, 4
          %s378 = int_to_ptr.vmem [resolvable:$true] %s377
          %s379 = sshll.u32 %s375, 4
          %s380 = int_to_ptr.hbm [resolvable:$true] %s379
          %382 = dma.vmem_to_hbm [thread:$0]  %s378, 256, %s380, %s362
        $region56: #{tpu_custom_call.1} parent=35 // pred_fallthru
          _
      $region36: #{tpu_custom_call.1} parent=5 // pred_fallthru
        _
      %p383 = scmp.le.s32.totalorder 2, %s20
      // Predicated region
      $region57: #{tpu_custom_call.1} parent=5 // pred_check
        %p384 = pneg %p383
      $region58: #{tpu_custom_call.1} parent=5 // pred_check_branch
        %386 = sbr.rel (%p384) target = $region60
      $region59: #{tpu_custom_call.1} parent=5 // pred_region
        %s387 = ssub.s32 %s20, 2
        // Predicated region
        $region61: #{tpu_custom_call.1} parent=59 // pred_check
          %p388 = pneg %p164
        $region62: #{tpu_custom_call.1} parent=59 // pred_check_branch
          %390 = sbr.rel (%p388) target = $region64
        $region63: #{tpu_custom_call.1} parent=59 // pred_region
          %s391 = sand.u32 %s149, 1
          %s392 = scalar_lea.sflag [#allocation4], %s391
          %s393 = sand.u32 %s149, 1
          %s394 = smul.addr %s393, 16
          %s395 = scalar_lea.vmem [#allocation10], %s394
          %397 = dma.done %s392, 256
        $region64: #{tpu_custom_call.1} parent=59 // pred_fallthru
          _
      $region60: #{tpu_custom_call.1} parent=5 // pred_fallthru
        _
    $region6: #{tpu_custom_call.1} parent=1 // loop_footer
      %s24 = sadd.s32 1, %s20
    $region7: #{tpu_custom_call.1} parent=1 // loop_footer_branch
      %19 = sbr.rel target = $region3
    $region8: #{tpu_custom_call.1} parent=1 // loop_exit
      _
    %398 = vsyncpa [#allocation3], 1
    %s399 = scalar_lea.sflag [#allocation3], 1
    %400 = vsyncpa %s399, 1
    %401 = vsyncpa [#allocation7], 1
    %s402 = scalar_lea.sflag [#allocation7], 1
    %403 = vsyncpa %s402, 1
    %404 = vsyncpa [#allocation4], 1
    %s405 = scalar_lea.sflag [#allocation4], 1
    %406 = vsyncpa %s405, 1
    %407 = vsyncpa [#allocation5], 1
    %s408 = scalar_lea.sflag [#allocation5], 1
    %409 = vsyncpa %s408, 1

</llo_original>
